<compile_context>
chip_gen: v6e
topology: v6e:2x2x1
jax: 0.10.0
libtpu: 0.0.40
codegen_flags: <defaults>
</compile_context>

<pallas_src>
import jax
import jax.numpy as jnp
from jax.experimental import pallas as pl
from jax.experimental.pallas import tpu as pltpu

_LANE_CHUNK = 256  # lanes processed per inner fori_loop iteration
_HIDDEN = 64


def _make_mlp_kernel(tb, chunk):
    n_chunks = tb // chunk
    unroll = min(4, n_chunks)  # partial unroll: bound code size / vreg ranges

    def kernel(x_ref, p_ref, w2_ref, o_ref):
        # Hoist the (tiny) weight loads / unpacking out of the chunk loop.
        p = p_ref[...]          # (64, 8) packed columns (folded params)
        w1f = p[:, 0:1]         # (64, 1)  0.5 * W1
        b1f = p[:, 1:2]         # (64, 1)  0.5 * b1
        b2f = p[:, 2:3]         # (64, 1)  0.5*b2 + 0.25*W2@1
        w3f = p[:, 3:4]         # (64, 1)  0.5 * W3^T
        b3f = p[0:1, 4:5]       # (1, 1)   b3 + 0.5*sum(W3)
        w2f = w2_ref[...]       # (64, 64) 0.25 * W2

        def chunk_body(c, carry):
            off = pl.multiple_of(c * chunk, chunk)
            xc = x_ref[:, pl.ds(off, chunk)]                      # (1, chunk)

            # layer 1: rank-1 outer product + bias on the VPU, tanh on the EUP
            t1 = jnp.tanh(w1f * xc + b1f)                         # (64, chunk)

            # layer 2: the only real matmul -> MXU, f32 accumulation
            t2 = jnp.tanh(
                jnp.dot(w2f, t1, preferred_element_type=jnp.float32) + b2f
            )                                                     # (64, chunk)

            # layer 3: N=1 output -> VPU multiply + XLU sublane reduce,
            # producing a lane-dense (1, chunk) row (unmasked store).
            yc = jnp.sum(w3f * t2, axis=0, keepdims=True) + b3f   # (1, chunk)
            o_ref[:, pl.ds(off, chunk)] = yc.astype(o_ref.dtype)
            return carry

        jax.lax.fori_loop(0, n_chunks, chunk_body, 0, unroll=unroll)

    return kernel


def _fold_params(params):
    """Fold sigmoid = 0.5*(tanh(x/2)+1) affine terms into the linear layers.

    After folding, the network is exactly:
        t1 = tanh(W1f x + b1f);  t2 = tanh(W2f t1 + b2f);  y = W3f t2 + b3f
    All scales are powers of two; the @ones sums add ~1e-7-level f32 rounding.
    """
    w1, b1 = params["w1"], params["b1"]   # (64,1), (64,1)
    w2, b2 = params["w2"], params["b2"]   # (64,64), (64,1)
    w3, b3 = params["w3"], params["b3"]   # (1,64),  (1,1)

    w1f = 0.5 * w1
    b1f = 0.5 * b1
    w2f = 0.25 * w2
    b2f = 0.5 * b2 + 0.25 * jnp.sum(w2, axis=1, keepdims=True)
    w3f_col = 0.5 * w3.T                                   # (64, 1)
    b3f = b3 + 0.5 * jnp.sum(w3)                           # (1, 1)

    # Pack the five small column params into one (64, 8) array (one DMA /
    # one BlockSpec instead of five lane-padded (64,128) VMEM tiles).
    packed = jnp.zeros((_HIDDEN, 8), jnp.float32)
    packed = packed.at[:, 0].set(w1f[:, 0])
    packed = packed.at[:, 1].set(b1f[:, 0])
    packed = packed.at[:, 2].set(b2f[:, 0])
    packed = packed.at[:, 3].set(w3f_col[:, 0])
    packed = packed.at[0, 4].set(b3f[0, 0])
    return packed, w2f.astype(jnp.float32)


def mlp_forward(x, params, *, batch_tile=4096):
    """x: (N, 1) float32. params: PyTorch-layout weights (see init_params)."""
    N = x.shape[0]
    packed, w2f = _fold_params(params)

    # Batch tile: multiple of the inner lane chunk. Cap it so that, whenever
    # the batch allows, the grid has >= 2 "parallel" steps (v7x has 2 TCs that
    # only share work via the parallel grid axis).
    tb = max(_LANE_CHUNK, (batch_tile // _LANE_CHUNK) * _LANE_CHUNK)
    n_lane_chunks = pl.cdiv(N, _LANE_CHUNK)
    if n_lane_chunks >= 2:
        tb = min(tb, pl.cdiv(n_lane_chunks, 2) * _LANE_CHUNK)
    else:
        tb = _LANE_CHUNK
    grid = (pl.cdiv(N, tb),)

    # No jnp.pad (no extra HBM pass): (N,1) -> (1,N) is layout-preserving.
    # Pallas masks the partial tail block; garbage tail lanes are lane-local
    # (all per-batch math is lane-wise) and are never part of valid outputs.
    x_row = x.reshape(1, N)

    resident = lambda i: (0, 0)  # weights: same (resident) block every step

    out_row = pl.pallas_call(
        _make_mlp_kernel(tb, _LANE_CHUNK),
        out_shape=jax.ShapeDtypeStruct((1, N), jnp.float32),
        grid_spec=pltpu.PrefetchScalarGridSpec(
            num_scalar_prefetch=0,
            grid=grid,
            in_specs=[
                pl.BlockSpec((1, tb), lambda i: (0, i)),  # x: lane-dense tile
                pl.BlockSpec(packed.shape, resident),     # (64, 8) packed cols
                pl.BlockSpec(w2f.shape, resident),        # (64, 64)
            ],
            out_specs=pl.BlockSpec((1, tb), lambda i: (0, i)),
        ),
        compiler_params=pltpu.CompilerParams(
            dimension_semantics=("parallel",),
        ),
    )(x_row, packed, w2f)

    return out_row.reshape(N, 1)


def init_params(key):
    """PyTorch nn.Linear default init: U(-1/sqrt(fan_in), +1/sqrt(fan_in)).

    Weights in PyTorch (out_features, in_features) layout; biases stored as
    (out_features, 1) columns to match the kernel's (features, batch) math.
    """
    def linear(key, fan_in, fan_out):
        kw, kb = jax.random.split(key)
        bound = 1.0 / jnp.sqrt(jnp.float32(fan_in))
        w = jax.random.uniform(kw, (fan_out, fan_in), jnp.float32, -bound, bound)
        b = jax.random.uniform(kb, (fan_out, 1), jnp.float32, -bound, bound)
        return w, b

    k1, k2, k3 = jax.random.split(key, 3)
    w1, b1 = linear(k1, 1, _HIDDEN)        # (64, 1), (64, 1)
    w2, b2 = linear(k2, _HIDDEN, _HIDDEN)  # (64, 64), (64, 1)
    w3, b3 = linear(k3, _HIDDEN, 1)        # (1, 64), (1, 1)
    return {"w1": w1, "b1": b1, "w2": w2, "b2": b2, "w3": w3, "b3": b3}


def mlp_reference(x, p):
    # Same math as the torch module: y = x @ W.T + b per layer, sigmoid between.
    h1 = jax.nn.sigmoid(x @ p["w1"].T + p["b1"].T)
    h2 = jax.nn.sigmoid(h1 @ p["w2"].T + p["b2"].T)
    return h2 @ p["w3"].T + p["b3"].T


if __name__ == "__main__":
    key = jax.random.PRNGKey(0)
    kx, kp = jax.random.split(key)

    N = 1000  # not a multiple of the tile -> exercises the masked tail block
    x = jax.random.normal(kx, (N, 1), jnp.float32)
    params = init_params(kp)

    out = mlp_forward(x, params)  # tb capped -> 2 grid steps (both TCs on v7x)
    out = jax.block_until_ready(out)

    ref = mlp_reference(x, params)
    assert out.shape == (N, 1)
    assert jnp.allclose(out, ref, atol=1e-4, rtol=1e-4), float(
        jnp.max(jnp.abs(out - ref))
    )

    print("KERNEL_OK")
</pallas_src>

<mosaic_0001>
module attributes {stable_mosaic.version = 11 : i64} {
  func.func @kernel(%arg0: i32, %arg1: memref<1x512xf32, #tpu.memory_space<vmem>>, %arg2: memref<64x8xf32, #tpu.memory_space<vmem>>, %arg3: memref<64x64xf32, #tpu.memory_space<vmem>>, %arg4: memref<1x512xf32, #tpu.memory_space<vmem>>) attributes {dimension_semantics = [#tpu.dimension_semantics<parallel>], iteration_bounds = array<i64: 2>, scalar_prefetch = 0 : i64, scratch_operands = 0 : i64, tpu.core_type = #tpu.core_type<tc>, window_params = [{transform_indices = @transform_0, window_bounds = array<i64: 1, 512>}, {pipeline_mode = #tpu.pipeline_mode<synchronous>, transform_indices = @transform_1, window_bounds = array<i64: 64, 8>}, {pipeline_mode = #tpu.pipeline_mode<synchronous>, transform_indices = @transform_2, window_bounds = array<i64: 64, 64>}, {transform_indices = @transform_3, window_bounds = array<i64: 1, 512>}]} {
    %c0 = arith.constant 0 : index
    %c0_0 = arith.constant 0 : index
    %0 = vector.load %arg2[%c0, %c0_0] : memref<64x8xf32, #tpu.memory_space<vmem>>, vector<64x8xf32>
    %1 = vector.extract_strided_slice %0 {offsets = [0, 0], sizes = [64, 1], strides = [1, 1]} : vector<64x8xf32> to vector<64x1xf32>
    %2 = vector.extract_strided_slice %0 {offsets = [0, 1], sizes = [64, 1], strides = [1, 1]} : vector<64x8xf32> to vector<64x1xf32>
    %3 = vector.extract_strided_slice %0 {offsets = [0, 2], sizes = [64, 1], strides = [1, 1]} : vector<64x8xf32> to vector<64x1xf32>
    %4 = vector.extract_strided_slice %0 {offsets = [0, 3], sizes = [64, 1], strides = [1, 1]} : vector<64x8xf32> to vector<64x1xf32>
    %5 = vector.extract_strided_slice %0 {offsets = [0, 4], sizes = [1, 1], strides = [1, 1]} : vector<64x8xf32> to vector<1x1xf32>
    %c0_1 = arith.constant 0 : index
    %c0_2 = arith.constant 0 : index
    %6 = vector.load %arg3[%c0_1, %c0_2] : memref<64x64xf32, #tpu.memory_space<vmem>>, vector<64x64xf32>
    %c0_i32 = arith.constant 0 : i32
    %c256_i32 = arith.constant 256 : i32
    %7 = arith.muli %c0_i32, %c256_i32 : i32
    %8 = tpu.assume_multiple %7, 256 : i32
    %c0_3 = arith.constant 0 : index
    %9 = arith.index_cast %8 : i32 to index
    %10 = vector.load %arg1[%c0_3, %9] : memref<1x512xf32, #tpu.memory_space<vmem>>, vector<1x256xf32>
    %11 = vector.broadcast %1 : vector<64x1xf32> to vector<64x256xf32>
    %12 = vector.broadcast %10 : vector<1x256xf32> to vector<64x256xf32>
    %13 = arith.mulf %11, %12 : vector<64x256xf32>
    %14 = vector.broadcast %2 : vector<64x1xf32> to vector<64x256xf32>
    %15 = arith.addf %13, %14 : vector<64x256xf32>
    %16 = math.tanh %15 : vector<64x256xf32>
    %cst = arith.constant dense<0.000000e+00> : vector<64x256xf32>
    %17 = tpu.matmul %6, %16, %cst {dimension_numbers = #tpu.dot_dimension_numbers<[1], [0], [0], [1], [0, 0, 1, 1], [], []>} : vector<64x64xf32>, vector<64x256xf32>, vector<64x256xf32> -> vector<64x256xf32>
    %18 = vector.broadcast %3 : vector<64x1xf32> to vector<64x256xf32>
    %19 = arith.addf %17, %18 : vector<64x256xf32>
    %20 = math.tanh %19 : vector<64x256xf32>
    %21 = vector.broadcast %4 : vector<64x1xf32> to vector<64x256xf32>
    %22 = arith.mulf %21, %20 : vector<64x256xf32>
    %cst_4 = arith.constant dense<0.000000e+00> : vector<256xf32>
    %23 = vector.multi_reduction <add>, %22, %cst_4 [0] : vector<64x256xf32> to vector<256xf32>
    %24 = vector.shape_cast %23 : vector<256xf32> to vector<1x256xf32>
    %25 = vector.broadcast %5 : vector<1x1xf32> to vector<1x256xf32>
    %26 = arith.addf %24, %25 : vector<1x256xf32>
    %c0_5 = arith.constant 0 : index
    %27 = arith.index_cast %8 : i32 to index
    %28 = vector.load %arg4[%c0_5, %27] : memref<1x512xf32, #tpu.memory_space<vmem>>, vector<1x256xf32>
    tpu.vector_store %arg4[%c0_5, %27], %26 {strides = array<i32>} : memref<1x512xf32, #tpu.memory_space<vmem>>, vector<1x256xf32>,
    %c1_i32 = arith.constant 1 : i32
    %c256_i32_6 = arith.constant 256 : i32
    %29 = arith.muli %c1_i32, %c256_i32_6 : i32
    %30 = tpu.assume_multiple %29, 256 : i32
    %c0_7 = arith.constant 0 : index
    %31 = arith.index_cast %30 : i32 to index
    %32 = vector.load %arg1[%c0_7, %31] : memref<1x512xf32, #tpu.memory_space<vmem>>, vector<1x256xf32>
    %33 = vector.broadcast %1 : vector<64x1xf32> to vector<64x256xf32>
    %34 = vector.broadcast %32 : vector<1x256xf32> to vector<64x256xf32>
    %35 = arith.mulf %33, %34 : vector<64x256xf32>
    %36 = vector.broadcast %2 : vector<64x1xf32> to vector<64x256xf32>
    %37 = arith.addf %35, %36 : vector<64x256xf32>
    %38 = math.tanh %37 : vector<64x256xf32>
    %cst_8 = arith.constant dense<0.000000e+00> : vector<64x256xf32>
    %39 = tpu.matmul %6, %38, %cst_8 {dimension_numbers = #tpu.dot_dimension_numbers<[1], [0], [0], [1], [0, 0, 1, 1], [], []>} : vector<64x64xf32>, vector<64x256xf32>, vector<64x256xf32> -> vector<64x256xf32>
    %40 = vector.broadcast %3 : vector<64x1xf32> to vector<64x256xf32>
    %41 = arith.addf %39, %40 : vector<64x256xf32>
    %42 = math.tanh %41 : vector<64x256xf32>
    %43 = vector.broadcast %4 : vector<64x1xf32> to vector<64x256xf32>
    %44 = arith.mulf %43, %42 : vector<64x256xf32>
    %cst_9 = arith.constant dense<0.000000e+00> : vector<256xf32>
    %45 = vector.multi_reduction <add>, %44, %cst_9 [0] : vector<64x256xf32> to vector<256xf32>
    %46 = vector.shape_cast %45 : vector<256xf32> to vector<1x256xf32>
    %47 = vector.broadcast %5 : vector<1x1xf32> to vector<1x256xf32>
    %48 = arith.addf %46, %47 : vector<1x256xf32>
    %c0_10 = arith.constant 0 : index
    %49 = arith.index_cast %30 : i32 to index
    %50 = vector.load %arg4[%c0_10, %49] : memref<1x512xf32, #tpu.memory_space<vmem>>, vector<1x256xf32>
    tpu.vector_store %arg4[%c0_10, %49], %48 {strides = array<i32>} : memref<1x512xf32, #tpu.memory_space<vmem>>, vector<1x256xf32>,
    %c2_i32 = arith.constant 2 : i32
    return
  }
  func.func @transform_0(%arg0: i32) -> (i32, i32) {
    %c0_i32 = arith.constant 0 : i32
    %c0_i32_0 = arith.constant 0 : i32
    return %c0_i32, %arg0 : i32, i32
  }
  func.func @transform_1(%arg0: i32) -> (i32, i32) {
    %c0_i32 = arith.constant 0 : i32
    %c0_i32_0 = arith.constant 0 : i32
    %c0_i32_1 = arith.constant 0 : i32
    return %c0_i32, %c0_i32_0 : i32, i32
  }
  func.func @transform_2(%arg0: i32) -> (i32, i32) {
    %c0_i32 = arith.constant 0 : i32
    %c0_i32_0 = arith.constant 0 : i32
    %c0_i32_1 = arith.constant 0 : i32
    return %c0_i32, %c0_i32_0 : i32, i32
  }
  func.func @transform_3(%arg0: i32) -> (i32, i32) {
    %c0_i32 = arith.constant 0 : i32
    %c0_i32_0 = arith.constant 0 : i32
    return %c0_i32, %arg0 : i32, i32
  }
}

</mosaic_0001>

<llo_original>
// kernel: tpu_custom_call.1
$region0: #{tpu_custom_call.1}
  #allocation0 [shape = 'u32[]', space=smem, size = 0x4, offset = 0x4, fixed_abs, tag = 'smem constant byte address 0x4 - core index']
  #allocation1 [shape = 'u32[144,128]{1,0:T(1,128)}', space=vmem, size = 0x12000, scoped, tag = 'internal scratch']
  %s0 = inlined_call_operand.vmem [shape: f32[1,1000], index: 0, kind: input, shape index: {}]
  %s1 = inlined_call_operand.vmem [shape: f32[64,8], index: 1, kind: input, shape index: {}]
  %s2 = inlined_call_operand.vmem [shape: f32[64,64], index: 2, kind: input, shape index: {}]
  %s3 = inlined_call_operand.hbm [shape: f32[1,1000], index: 3, kind: output, shape index: {}]
  %s4 = sld [smem:[#allocation0]]
  $region45: #{tpu_custom_call.1} parent=0
    _
  %s6 = ssub.s32 1, %s4
  %s7 = scalar_select 0, %s6, %s4
  $region1: #{tpu_custom_call.1} parent=0
    #allocation2 [shape = 'u8[4096]{0}', space=vmem, size = 0x1000, scoped, tag = 'output window, operand 0']
    #allocation3 [shape = 's32[2]{0}', space=sflag, size = 0x8, scoped, tag = 'scoped memory for tpu_custom_call.1']
    %8 = vsyncpa [#allocation3], 0
    %s9 = scalar_lea.sflag [#allocation3], 1
    %10 = vsyncpa %s9, 0
    loop: start=0, step=1, limit=4
    $region2: #{tpu_custom_call.1} parent=1 // loop_pre_header
      _
    $region3: #{tpu_custom_call.1} parent=1 // loop_header
      %s12 = sphi 0, %s16
      %p13 = scmp.ge.s32.totalorder %s12, 4
      %s22 = sphi 0, %s24
      %s25 = sphi 0, %s22
      %s26 = sphi 0, %s25
      %s42 = sphi 0, %s26
      %s46 = sphi 0, %s46
      %s48 = sphi 0, %s46
      %s49 = sphi 0, %s48
      %s63 = sphi 0, %s49
      %s67 = sphi 0, %s67
      %s69 = sphi 0, %s67
      %s70 = sphi 0, %s69
      %s84 = sphi 0, %s70
      %s90 = sphi 0, %s92
      %s93 = sphi 0, %s90
      %s94 = sphi 0, %s93
      %s110 = sphi 0, %s94
    $region4: #{tpu_custom_call.1} parent=1 // loop_header_branch
      %15 = sbr.rel (%p13) target = $region8
    $region5: #{tpu_custom_call.1} parent=1 // loop_body
      %s17 = ssub.s32 %s12, 1
      %s18 = ssub.s32 %s12, 2
      %s19 = sadd.s32 %s12, 1
      %s20 = ssub.s32 %s12, %s19
      %p21 = scmp.eq.s32.totalorder %s20, 0
      %s23 = sadd.s32 %s22, 1
      %s24 = scalar_select %p21, %s22, %s23
      %p27 = pneg %p21
      %p28 = scmp.eq.s32.totalorder %s12, 1
      %p29 = por %p27, %p28
      %p30 = scmp.ne.s32.totalorder %s22, %s25
      %p31 = scmp.eq.s32.totalorder %s12, 0
      %p32 = por %p30, %p31
      %p33 = scmp.ne.s32.totalorder %s22, %s25
      %p34 = scmp.eq.s32.totalorder %s17, 1
      %p35 = por %p33, %p34
      %p36 = scmp.ne.s32.totalorder %s25, %s26
      %p37 = scmp.eq.s32.totalorder %s17, 0
      %p38 = por %p36, %p37
      %p39 = scmp.ne.s32.totalorder %s25, %s26
      %p40 = scmp.eq.s32.totalorder %s18, 1
      %p41 = por %p39, %p40
      %p43 = scmp.ne.s32.totalorder %s26, %s42
      %p44 = scmp.eq.s32.totalorder %s18, 0
      %p45 = por %p43, %p44
      %s47 = sadd.s32 %s46, 1
      %p50 = scmp.eq.s32.totalorder %s12, 1
      %p51 = scmp.ne.s32.totalorder %s46, %s48
      %p52 = scmp.eq.s32.totalorder %s12, 0
      %p53 = por %p51, %p52
      %p54 = scmp.ne.s32.totalorder %s46, %s48
      %p55 = scmp.eq.s32.totalorder %s17, 1
      %p56 = por %p54, %p55
      %p57 = scmp.ne.s32.totalorder %s48, %s49
      %p58 = scmp.eq.s32.totalorder %s17, 0
      %p59 = por %p57, %p58
      %p60 = scmp.ne.s32.totalorder %s48, %s49
      %p61 = scmp.eq.s32.totalorder %s18, 1
      %p62 = por %p60, %p61
      %p64 = scmp.ne.s32.totalorder %s49, %s63
      %p65 = scmp.eq.s32.totalorder %s18, 0
      %p66 = por %p64, %p65
      %s68 = sadd.s32 %s67, 1
      %p71 = scmp.eq.s32.totalorder %s12, 1
      %p72 = scmp.ne.s32.totalorder %s67, %s69
      %p73 = scmp.eq.s32.totalorder %s12, 0
      %p74 = por %p72, %p73
      %p75 = scmp.ne.s32.totalorder %s67, %s69
      %p76 = scmp.eq.s32.totalorder %s17, 1
      %p77 = por %p75, %p76
      %p78 = scmp.ne.s32.totalorder %s69, %s70
      %p79 = scmp.eq.s32.totalorder %s17, 0
      %p80 = por %p78, %p79
      %p81 = scmp.ne.s32.totalorder %s69, %s70
      %p82 = scmp.eq.s32.totalorder %s18, 1
      %p83 = por %p81, %p82
      %p85 = scmp.ne.s32.totalorder %s70, %s84
      %p86 = scmp.eq.s32.totalorder %s18, 0
      %p87 = por %p85, %p86
      %s88 = ssub.s32 %s12, %s19
      %p89 = scmp.eq.s32.totalorder %s88, 0
      %s91 = sadd.s32 %s90, 1
      %s92 = scalar_select %p89, %s90, %s91
      %p95 = pneg %p89
      %p96 = scmp.eq.s32.totalorder %s12, 1
      %p97 = por %p95, %p96
      %p98 = scmp.ne.s32.totalorder %s90, %s93
      %p99 = scmp.eq.s32.totalorder %s12, 0
      %p100 = por %p98, %p99
      %p101 = scmp.ne.s32.totalorder %s90, %s93
      %p102 = scmp.eq.s32.totalorder %s17, 1
      %p103 = por %p101, %p102
      %p104 = scmp.ne.s32.totalorder %s93, %s94
      %p105 = scmp.eq.s32.totalorder %s17, 0
      %p106 = por %p104, %p105
      %p107 = scmp.ne.s32.totalorder %s93, %s94
      %p108 = scmp.eq.s32.totalorder %s18, 1
      %p109 = por %p107, %p108
      %p111 = scmp.ne.s32.totalorder %s94, %s110
      %p112 = scmp.eq.s32.totalorder %s18, 0
      %p113 = por %p111, %p112
      %p114 = scmp.le.s32.totalorder 1, %s12
      %p115 = scmp.lt.s32.totalorder %s12, 3
      %p116 = pnand %p114, %p115
      %p117 = pneg %p116
      // Predicated region
      $region9: #{tpu_custom_call.1} parent=5 // pred_check
        _
      $region10: #{tpu_custom_call.1} parent=5 // pred_check_branch
        %119 = sbr.rel (%p116) target = $region12
      $region11: #{tpu_custom_call.1} parent=5 // pred_region
        %s120 = ssub.s32 %s12, 1
        // Predicated region
        $region13: #{tpu_custom_call.1} parent=11 // pred_check
          %p121 = pneg %p59
        $region14: #{tpu_custom_call.1} parent=11 // pred_check_branch
          %123 = sbr.rel (%p121) target = $region16
        $region15: #{tpu_custom_call.1} parent=11 // pred_region
          _
        $region16: #{tpu_custom_call.1} parent=11 // pred_fallthru
          _
        // Predicated region
        $region17: #{tpu_custom_call.1} parent=11 // pred_check
          %p124 = pneg %p80
        $region18: #{tpu_custom_call.1} parent=11 // pred_check_branch
          %126 = sbr.rel (%p124) target = $region20
        $region19: #{tpu_custom_call.1} parent=11 // pred_region
          _
        $region20: #{tpu_custom_call.1} parent=11 // pred_fallthru
          _
      $region12: #{tpu_custom_call.1} parent=5 // pred_fallthru
        _
      %p127 = scmp.lt.s32.totalorder %s12, 2
      // Predicated region
      $region21: #{tpu_custom_call.1} parent=5 // pred_check
        %p128 = pneg %p127
      $region22: #{tpu_custom_call.1} parent=5 // pred_check_branch
        %130 = sbr.rel (%p128) target = $region24
      $region23: #{tpu_custom_call.1} parent=5 // pred_region
        // Predicated region
        $region25: #{tpu_custom_call.1} parent=23 // pred_check
          %p131 = pneg %p32
        $region26: #{tpu_custom_call.1} parent=23 // pred_check_branch
          %133 = sbr.rel (%p131) target = $region28
        $region27: #{tpu_custom_call.1} parent=23 // pred_region
          %s134 = smul.u32 4, %s12
          %p135 = scmp.lt.s32.totalorder %s134, 7
          %s136 = scalar_select %p135, %s134, 7
          %s137 = scalar_lea.vmem %s0, %s136
          %s138 = smul.u32 4, %s12
        $region28: #{tpu_custom_call.1} parent=23 // pred_fallthru
          _
      $region24: #{tpu_custom_call.1} parent=5 // pred_fallthru
        _
      %p139 = scmp.le.s32.totalorder 1, %s12
      %p140 = scmp.lt.s32.totalorder %s12, 3
      %p141 = pnand %p139, %p140
      %p142 = pneg %p141
      // Predicated region
      $region29: #{tpu_custom_call.1} parent=5 // pred_check
        _
      $region30: #{tpu_custom_call.1} parent=5 // pred_check_branch
        %144 = sbr.rel (%p141) target = $region32
      $region31: #{tpu_custom_call.1} parent=5 // pred_region
        %s145 = ssub.s32 %s12, 1
        %s146 = smul.u32 4, %s17
        %p147 = scmp.lt.s32.totalorder %s146, 7
        %s148 = scalar_select %p147, %s146, 7
        %s149 = scalar_lea.vmem %s0, %s148
        %p150 = pneg %p38
        %p151 = pneg %p35
        %p152 = pneg %p59
        %p153 = pneg %p56
        %p154 = pneg %p80
        %p155 = pneg %p77
        %p156 = pneg %p106
        %p157 = pneg %p103
        %s158 = sand.u32 %s93, 1
        %s159 = scalar_lea.sflag [#allocation3], %s158
        %s160 = sand.u32 %s93, 1
        %s161 = smul.addr %s160, 4
        %s162 = scalar_lea.vmem [#allocation2], %s161
        %s163 = smul.u32 4, %s17
        %p164 = scmp.lt.s32.totalorder %s163, 7
        %s165 = scalar_select %p164, %s163, 7
        %s166 = scalar_lea.vmem %s0, %s165
        %s167 = smul.u32 4, %s17
        %s168 = smul.u32 4, %s17
        %v169 = vld [vmem:[%s1] sm:$0xff]
        %v170 = vld [vmem:[%s1 + $0x8] sm:$0xff]
        %v171 = vld [vmem:[%s1 + $0x10] sm:$0xff]
        %v172 = vld [vmem:[%s1 + $0x18] sm:$0xff]
        %v173 = vld [vmem:[%s1 + $0x20] sm:$0xff]
        %v174 = vld [vmem:[%s1 + $0x28] sm:$0xff]
        %v175 = vld [vmem:[%s1 + $0x30] sm:$0xff]
        %v176 = vld [vmem:[%s1 + $0x38] sm:$0xff]
        %v177 = vld [vmem:[%s2] sm:$0xff]
        %v178 = vld [vmem:[%s2 + $0x8] sm:$0xff]
        %v179 = vld [vmem:[%s2 + $0x10] sm:$0xff]
        %v180 = vld [vmem:[%s2 + $0x18] sm:$0xff]
        %v181 = vld [vmem:[%s2 + $0x20] sm:$0xff]
        %v182 = vld [vmem:[%s2 + $0x28] sm:$0xff]
        %v183 = vld [vmem:[%s2 + $0x30] sm:$0xff]
        %v184 = vld [vmem:[%s2 + $0x38] sm:$0xff]
        %v185 = vld [vmem:[%s166] sm:$0x3]
        %187 = vset.pattern.permute.xlu0 0
        %188 = vperm.xlu0 %187, %v169
        %v189 = vpop.permute.xlu0 %188
        %192 = vset.pattern.permute.xlu0 0
        %193 = vperm.xlu0 %192, %v170
        %v194 = vpop.permute.xlu0 %193
        %197 = vset.pattern.permute.xlu0 0
        %198 = vperm.xlu0 %197, %v171
        %v199 = vpop.permute.xlu0 %198
        %202 = vset.pattern.permute.xlu0 0
        %203 = vperm.xlu0 %202, %v172
        %v204 = vpop.permute.xlu0 %203
        %207 = vset.pattern.permute.xlu0 0
        %208 = vperm.xlu0 %207, %v173
        %v209 = vpop.permute.xlu0 %208
        %212 = vset.pattern.permute.xlu0 0
        %213 = vperm.xlu0 %212, %v174
        %v214 = vpop.permute.xlu0 %213
        %217 = vset.pattern.permute.xlu0 0
        %218 = vperm.xlu0 %217, %v175
        %v219 = vpop.permute.xlu0 %218
        %222 = vset.pattern.permute.xlu0 0
        %223 = vperm.xlu0 %222, %v176
        %v224 = vpop.permute.xlu0 %223
        %v227 = vlaneseq
        %v228 = vshrl.u32 %v227, 7
        %v229 = vsub.s32 0, %v228
        %v230 = vrot.slane %v185, %v229
        %v231 = vlaneseq
        %v232 = vshrl.u32 %v231, 7
        %v233 = vsub.s32 1, %v232
        %v234 = vrot.slane %v185, %v233
        %v237 = vmul.f32 %v189, %v230
        %v238 = vmul.f32 %v189, %v234
        %v239 = vmul.f32 %v194, %v230
        %v240 = vmul.f32 %v194, %v234
        %v241 = vmul.f32 %v199, %v230
        %v242 = vmul.f32 %v199, %v234
        %v243 = vmul.f32 %v204, %v230
        %v244 = vmul.f32 %v204, %v234
        %v245 = vmul.f32 %v209, %v230
        %v246 = vmul.f32 %v209, %v234
        %v247 = vmul.f32 %v214, %v230
        %v248 = vmul.f32 %v214, %v234
        %v249 = vmul.f32 %v219, %v230
        %v250 = vmul.f32 %v219, %v234
        %v251 = vmul.f32 %v224, %v230
        %v252 = vmul.f32 %v224, %v234
        %253 = vset.pattern.permute.xlu0 1
        %254 = vperm.xlu0 %253, %v169
        %v255 = vpop.permute.xlu0 %254
        %257 = vset.pattern.permute.xlu0 1
        %258 = vperm.xlu0 %257, %v170
        %v259 = vpop.permute.xlu0 %258
        %261 = vset.pattern.permute.xlu0 1
        %262 = vperm.xlu0 %261, %v171
        %v263 = vpop.permute.xlu0 %262
        %265 = vset.pattern.permute.xlu0 1
        %266 = vperm.xlu0 %265, %v172
        %v267 = vpop.permute.xlu0 %266
        %269 = vset.pattern.permute.xlu0 1
        %270 = vperm.xlu0 %269, %v173
        %v271 = vpop.permute.xlu0 %270
        %273 = vset.pattern.permute.xlu0 1
        %274 = vperm.xlu0 %273, %v174
        %v275 = vpop.permute.xlu0 %274
        %277 = vset.pattern.permute.xlu0 1
        %278 = vperm.xlu0 %277, %v175
        %v279 = vpop.permute.xlu0 %278
        %281 = vset.pattern.permute.xlu0 1
        %282 = vperm.xlu0 %281, %v176
        %v283 = vpop.permute.xlu0 %282
        %v285 = vadd.f32 %v237, %v255
        %v286 = vadd.f32 %v238, %v255
        %v287 = vadd.f32 %v239, %v259
        %v288 = vadd.f32 %v240, %v259
        %v289 = vadd.f32 %v241, %v263
        %v290 = vadd.f32 %v242, %v263
        %v291 = vadd.f32 %v243, %v267
        %v292 = vadd.f32 %v244, %v267
        %v293 = vadd.f32 %v245, %v271
        %v294 = vadd.f32 %v246, %v271
        %v295 = vadd.f32 %v247, %v275
        %v296 = vadd.f32 %v248, %v275
        %v297 = vadd.f32 %v249, %v279
        %v298 = vadd.f32 %v250, %v279
        %v299 = vadd.f32 %v251, %v283
        %v300 = vadd.f32 %v252, %v283
        %v301 = vtanh.pop %v285
        %v302 = vtanh.pop %v286
        %v303 = vtanh.pop %v287
        %v304 = vtanh.pop %v288
        %v305 = vtanh.pop %v289
        %v306 = vtanh.pop %v290
        %v307 = vtanh.pop %v291
        %v308 = vtanh.pop %v292
        %v309 = vtanh.pop %v293
        %v310 = vtanh.pop %v294
        %v311 = vtanh.pop %v295
        %v312 = vtanh.pop %v296
        %v313 = vtanh.pop %v297
        %v314 = vtanh.pop %v298
        %v315 = vtanh.pop %v299
        %v316 = vtanh.pop %v300
        %317 = vset.pattern.permute.xlu0 2
        %318 = vperm.xlu0 %317, %v169
        %v319 = vpop.permute.xlu0 %318
        %321 = vset.pattern.permute.xlu0 2
        %322 = vperm.xlu0 %321, %v170
        %v323 = vpop.permute.xlu0 %322
        %325 = vset.pattern.permute.xlu0 2
        %326 = vperm.xlu0 %325, %v171
        %v327 = vpop.permute.xlu0 %326
        %329 = vset.pattern.permute.xlu0 2
        %330 = vperm.xlu0 %329, %v172
        %v331 = vpop.permute.xlu0 %330
        %333 = vset.pattern.permute.xlu0 2
        %334 = vperm.xlu0 %333, %v173
        %v335 = vpop.permute.xlu0 %334
        %337 = vset.pattern.permute.xlu0 2
        %338 = vperm.xlu0 %337, %v174
        %v339 = vpop.permute.xlu0 %338
        %341 = vset.pattern.permute.xlu0 2
        %342 = vperm.xlu0 %341, %v175
        %v343 = vpop.permute.xlu0 %342
        %345 = vset.pattern.permute.xlu0 2
        %346 = vperm.xlu0 %345, %v176
        %v347 = vpop.permute.xlu0 %346
        %vm349 = vcmask 523264
        %v351 = vsel %vm349, %v177, 0
        %v354 = vsel %vm349, %v178, 0
        %v357 = vsel %vm349, %v179, 0
        %v360 = vsel %vm349, %v180, 0
        %v363 = vsel %vm349, %v181, 0
        %v366 = vsel %vm349, %v182, 0
        %v369 = vsel %vm349, %v183, 0
        %v372 = vsel %vm349, %v184, 0
        %374 = vmatprep.subr.mxu0 0.0
        %375 = vmatpush1.msra.mxu0 0.0
        %376 = vmatprep.subr.mxu0 0.0
        %377 = vmatpush1.msra.mxu0 0.0
        %378 = vmatprep.subr.mxu0 0.0
        %379 = vmatpush1.msra.mxu0 0.0
        %380 = vmatprep.subr.mxu0 0.0
        %381 = vmatpush1.msra.mxu0 0.0
        %382 = vmatprep.subr.mxu0 0.0
        %383 = vmatpush1.msra.mxu0 0.0
        %384 = vmatprep.subr.mxu0 0.0
        %385 = vmatpush1.msra.mxu0 0.0
        %386 = vmatprep.subr.mxu0 0.0
        %387 = vmatpush1.msra.mxu0 0.0
        %388 = vmatprep.subr.mxu0 0.0
        %389 = vmatpush1.msra.mxu0 0.0
        %390 = vmatprep.subr.mxu0 %v316
        %391 = vmatpush1.msra.mxu0 %v315
        %392 = vmatprep.subr.mxu0 %v314
        %393 = vmatpush1.msra.mxu0 %v313
        %394 = vmatprep.subr.mxu0 %v312
        %395 = vmatpush1.msra.mxu0 %v311
        %396 = vmatprep.subr.mxu0 %v310
        %397 = vmatpush1.msra.mxu0 %v309
        %398 = vmatprep.subr.mxu0 %v308
        %399 = vmatpush1.msra.mxu0 %v307
        %400 = vmatprep.subr.mxu0 %v306
        %401 = vmatpush1.msra.mxu0 %v305
        %402 = vmatprep.subr.mxu0 %v304
        %403 = vmatpush1.msra.mxu0 %v303
        %404 = vmatprep.subr.mxu0 %v302
        %405 = vmatpush1.msra.mxu0 %v301
        %406 = vmatprep.subr.mxu0 0.0
        %407 = vmatpush2.msra.mxu0 0.0
        %408 = vmatprep.subr.mxu0 0.0
        %409 = vmatpush2.msra.mxu0 0.0
        %410 = vmatprep.subr.mxu0 0.0
        %411 = vmatpush2.msra.mxu0 0.0
        %412 = vmatprep.subr.mxu0 0.0
        %413 = vmatpush2.msra.mxu0 0.0
        %414 = vmatprep.subr.mxu0 0.0
        %415 = vmatpush2.msra.mxu0 0.0
        %416 = vmatprep.subr.mxu0 0.0
        %417 = vmatpush2.msra.mxu0 0.0
        %418 = vmatprep.subr.mxu0 0.0
        %419 = vmatpush2.msra.mxu0 0.0
        %420 = vmatprep.subr.mxu0 0.0
        %421 = vmatpush2.msra.mxu0 0.0
        %422 = vmatprep.subr.mxu0 0.0
        %423 = vmatpush2.msra.mxu0 0.0
        %424 = vmatprep.subr.mxu0 0.0
        %425 = vmatpush2.msra.mxu0 0.0
        %426 = vmatprep.subr.mxu0 0.0
        %427 = vmatpush2.msra.mxu0 0.0
        %428 = vmatprep.subr.mxu0 0.0
        %429 = vmatpush2.msra.mxu0 0.0
        %430 = vmatprep.subr.mxu0 0.0
        %431 = vmatpush2.msra.mxu0 0.0
        %432 = vmatprep.subr.mxu0 0.0
        %433 = vmatpush2.msra.mxu0 0.0
        %434 = vmatprep.subr.mxu0 0.0
        %435 = vmatpush2.msra.mxu0 0.0
        %436 = vmatprep.subr.mxu0 0.0
        %437 = vmatpush2.msra.mxu0 0.0
        %438 = vmatprep.mubr.f32.mxu0 0.0
        %439 = vmatmul.mubr.f32.gmra.mxu0 %v351
        %v440 = vpop.f32.mrf.mxu0
        %v441 = vadd.f32 %v319, %v440
        %v442 = vpop.f32.mrf.mxu0
        %v443 = vadd.f32 %v319, %v442
        %444 = vmatprep.mubr.f32.mxu0 0.0
        %445 = vmatmul.mubr.f32.gmra.mxu0 %v354
        %v446 = vpop.f32.mrf.mxu0
        %v447 = vadd.f32 %v323, %v446
        %v448 = vpop.f32.mrf.mxu0
        %v449 = vadd.f32 %v323, %v448
        %450 = vmatprep.mubr.f32.mxu0 0.0
        %451 = vmatmul.mubr.f32.gmra.mxu0 %v357
        %v452 = vpop.f32.mrf.mxu0
        %v453 = vadd.f32 %v327, %v452
        %v454 = vpop.f32.mrf.mxu0
        %v455 = vadd.f32 %v327, %v454
        %456 = vmatprep.mubr.f32.mxu0 0.0
        %457 = vmatmul.mubr.f32.gmra.mxu0 %v360
        %v458 = vpop.f32.mrf.mxu0
        %v459 = vadd.f32 %v331, %v458
        %v460 = vpop.f32.mrf.mxu0
        %v461 = vadd.f32 %v331, %v460
        %462 = vmatprep.mubr.f32.mxu0 0.0
        %463 = vmatmul.mubr.f32.gmra.mxu0 %v363
        %v464 = vpop.f32.mrf.mxu0
        %v465 = vadd.f32 %v335, %v464
        %v466 = vpop.f32.mrf.mxu0
        %v467 = vadd.f32 %v335, %v466
        %468 = vmatprep.mubr.f32.mxu0 0.0
        %469 = vmatmul.mubr.f32.gmra.mxu0 %v366
        %v470 = vpop.f32.mrf.mxu0
        %v471 = vadd.f32 %v339, %v470
        %v472 = vpop.f32.mrf.mxu0
        %v473 = vadd.f32 %v339, %v472
        %474 = vmatprep.mubr.f32.mxu0 0.0
        %475 = vmatmul.mubr.f32.gmra.mxu0 %v369
        %v476 = vpop.f32.mrf.mxu0
        %v477 = vadd.f32 %v343, %v476
        %v478 = vpop.f32.mrf.mxu0
        %v479 = vadd.f32 %v343, %v478
        %480 = vmatprep.mubr.f32.mxu0 0.0
        %481 = vmatmul.mubr.f32.gmra.mxu0 %v372
        %v482 = vpop.f32.mrf.mxu0
        %v483 = vadd.f32 %v347, %v482
        %v484 = vpop.f32.mrf.mxu0
        %v485 = vadd.f32 %v347, %v484
        %486 = vdwg.mxu0
        %v487 = vtanh.pop %v441
        %v488 = vtanh.pop %v443
        %v489 = vtanh.pop %v447
        %v490 = vtanh.pop %v449
        %v491 = vtanh.pop %v453
        %v492 = vtanh.pop %v455
        %v493 = vtanh.pop %v459
        %v494 = vtanh.pop %v461
        %v495 = vtanh.pop %v465
        %v496 = vtanh.pop %v467
        %v497 = vtanh.pop %v471
        %v498 = vtanh.pop %v473
        %v499 = vtanh.pop %v477
        %v500 = vtanh.pop %v479
        %v501 = vtanh.pop %v483
        %v502 = vtanh.pop %v485
        %503 = vset.pattern.permute.xlu0 3
        %504 = vperm.xlu0 %503, %v169
        %v505 = vpop.permute.xlu0 %504
        %507 = vset.pattern.permute.xlu0 3
        %508 = vperm.xlu0 %507, %v170
        %v509 = vpop.permute.xlu0 %508
        %511 = vset.pattern.permute.xlu0 3
        %512 = vperm.xlu0 %511, %v171
        %v513 = vpop.permute.xlu0 %512
        %515 = vset.pattern.permute.xlu0 3
        %516 = vperm.xlu0 %515, %v172
        %v517 = vpop.permute.xlu0 %516
        %519 = vset.pattern.permute.xlu0 3
        %520 = vperm.xlu0 %519, %v173
        %v521 = vpop.permute.xlu0 %520
        %523 = vset.pattern.permute.xlu0 3
        %524 = vperm.xlu0 %523, %v174
        %v525 = vpop.permute.xlu0 %524
        %527 = vset.pattern.permute.xlu0 3
        %528 = vperm.xlu0 %527, %v175
        %v529 = vpop.permute.xlu0 %528
        %531 = vset.pattern.permute.xlu0 3
        %532 = vperm.xlu0 %531, %v176
        %v533 = vpop.permute.xlu0 %532
        %v535 = vmul.f32 %v505, %v487
        %v536 = vmul.f32 %v505, %v488
        %v537 = vmul.f32 %v509, %v489
        %v538 = vmul.f32 %v509, %v490
        %v539 = vmul.f32 %v513, %v491
        %v540 = vmul.f32 %v513, %v492
        %v541 = vmul.f32 %v517, %v493
        %v542 = vmul.f32 %v517, %v494
        %v543 = vmul.f32 %v521, %v495
        %v544 = vmul.f32 %v521, %v496
        %v545 = vmul.f32 %v525, %v497
        %v546 = vmul.f32 %v525, %v498
        %v547 = vmul.f32 %v529, %v499
        %v548 = vmul.f32 %v529, %v500
        %v549 = vmul.f32 %v533, %v501
        %v550 = vmul.f32 %v533, %v502
        %v551 = vadd.f32 %v535, %v537
        %v552 = vadd.f32 %v551, %v539
        %v553 = vadd.f32 %v552, %v541
        %v554 = vadd.f32 %v553, %v543
        %v555 = vadd.f32 %v554, %v545
        %v556 = vadd.f32 %v555, %v547
        %v557 = vadd.f32 %v556, %v549
        %v558 = vrot.slane %v557, 4
        %v559 = vadd.f32 %v557, %v558
        %v560 = vrot.slane %v559, 2
        %v561 = vadd.f32 %v559, %v560
        %v562 = vrot.slane %v561, 1
        %v563 = vadd.f32 %v561, %v562
        %v564 = vadd.f32 %v536, %v538
        %v565 = vadd.f32 %v564, %v540
        %v566 = vadd.f32 %v565, %v542
        %v567 = vadd.f32 %v566, %v544
        %v568 = vadd.f32 %v567, %v546
        %v569 = vadd.f32 %v568, %v548
        %v570 = vadd.f32 %v569, %v550
        %v571 = vrot.slane %v570, 4
        %v572 = vadd.f32 %v570, %v571
        %v573 = vrot.slane %v572, 2
        %v574 = vadd.f32 %v572, %v573
        %v575 = vrot.slane %v574, 1
        %v576 = vadd.f32 %v574, %v575
        %577 = vset.pattern.permute.xlu0 4
        %578 = vperm.xlu0 %577, %v169
        %v579 = vpop.permute.xlu0 %578
        %v581 = vadd.f32 %v563, %v579
        %v582 = vadd.f32 %v576, %v579
        %v585 = vcombine.low %v581, %v582
        %v587 = vunpack.c.l.s4 1966171168
        %v588 = vunpack.c.0.s8 %v587
        %v589 = vlaneseq
        %v590 = vshrl.u32 %v589, 7
        %v591 = vsub.s32 %v588, %v590
        %v592 = vrot.slane %v585, %v591
        %v594 = vunpack.c.l.s4 1966171168
        %v595 = vunpack.c.0.s8 %v594
        %v596 = vlaneseq
        %v597 = vshrl.u32 %v596, 7
        %v598 = vsub.s32 %v595, %v597
        %v599 = vrot.slane %v592, %v598
        %v601 = vlaneseq
        %vm602 = vcmp.ge.s32.totalorder %v601, 0
        %vm603 = vcmp.lt.s32.totalorder %v601, 256
        %vm604 = vmand %vm602, %vm603
        %605 = vst.msk [vmem:[%s162] sm:$0x3] %vm604, %v599
        %s606 = scalar_lea.vmem %s166, 2
        %v607 = vld [vmem:[%s606] sm:$0x3]
        %v609 = vlaneseq
        %v610 = vshrl.u32 %v609, 7
        %v611 = vsub.s32 0, %v610
        %v612 = vrot.slane %v607, %v611
        %v613 = vlaneseq
        %v614 = vshrl.u32 %v613, 7
        %v615 = vsub.s32 1, %v614
        %v616 = vrot.slane %v607, %v615
        %v619 = vmul.f32 %v189, %v612
        %v620 = vmul.f32 %v189, %v616
        %v621 = vmul.f32 %v194, %v612
        %v622 = vmul.f32 %v194, %v616
        %v623 = vmul.f32 %v199, %v612
        %v624 = vmul.f32 %v199, %v616
        %v625 = vmul.f32 %v204, %v612
        %v626 = vmul.f32 %v204, %v616
        %v627 = vmul.f32 %v209, %v612
        %v628 = vmul.f32 %v209, %v616
        %v629 = vmul.f32 %v214, %v612
        %v630 = vmul.f32 %v214, %v616
        %v631 = vmul.f32 %v219, %v612
        %v632 = vmul.f32 %v219, %v616
        %v633 = vmul.f32 %v224, %v612
        %v634 = vmul.f32 %v224, %v616
        %v635 = vadd.f32 %v619, %v255
        %v636 = vadd.f32 %v620, %v255
        %v637 = vadd.f32 %v621, %v259
        %v638 = vadd.f32 %v622, %v259
        %v639 = vadd.f32 %v623, %v263
        %v640 = vadd.f32 %v624, %v263
        %v641 = vadd.f32 %v625, %v267
        %v642 = vadd.f32 %v626, %v267
        %v643 = vadd.f32 %v627, %v271
        %v644 = vadd.f32 %v628, %v271
        %v645 = vadd.f32 %v629, %v275
        %v646 = vadd.f32 %v630, %v275
        %v647 = vadd.f32 %v631, %v279
        %v648 = vadd.f32 %v632, %v279
        %v649 = vadd.f32 %v633, %v283
        %v650 = vadd.f32 %v634, %v283
        %v651 = vtanh.pop %v635
        %v652 = vtanh.pop %v636
        %v653 = vtanh.pop %v637
        %v654 = vtanh.pop %v638
        %v655 = vtanh.pop %v639
        %v656 = vtanh.pop %v640
        %v657 = vtanh.pop %v641
        %v658 = vtanh.pop %v642
        %v659 = vtanh.pop %v643
        %v660 = vtanh.pop %v644
        %v661 = vtanh.pop %v645
        %v662 = vtanh.pop %v646
        %v663 = vtanh.pop %v647
        %v664 = vtanh.pop %v648
        %v665 = vtanh.pop %v649
        %v666 = vtanh.pop %v650
        %667 = vmatprep.subr.mxu0 0.0
        %668 = vmatpush1.msra.mxu0 0.0
        %669 = vmatprep.subr.mxu0 0.0
        %670 = vmatpush1.msra.mxu0 0.0
        %671 = vmatprep.subr.mxu0 0.0
        %672 = vmatpush1.msra.mxu0 0.0
        %673 = vmatprep.subr.mxu0 0.0
        %674 = vmatpush1.msra.mxu0 0.0
        %675 = vmatprep.subr.mxu0 0.0
        %676 = vmatpush1.msra.mxu0 0.0
        %677 = vmatprep.subr.mxu0 0.0
        %678 = vmatpush1.msra.mxu0 0.0
        %679 = vmatprep.subr.mxu0 0.0
        %680 = vmatpush1.msra.mxu0 0.0
        %681 = vmatprep.subr.mxu0 0.0
        %682 = vmatpush1.msra.mxu0 0.0
        %683 = vmatprep.subr.mxu0 %v666
        %684 = vmatpush1.msra.mxu0 %v665
        %685 = vmatprep.subr.mxu0 %v664
        %686 = vmatpush1.msra.mxu0 %v663
        %687 = vmatprep.subr.mxu0 %v662
        %688 = vmatpush1.msra.mxu0 %v661
        %689 = vmatprep.subr.mxu0 %v660
        %690 = vmatpush1.msra.mxu0 %v659
        %691 = vmatprep.subr.mxu0 %v658
        %692 = vmatpush1.msra.mxu0 %v657
        %693 = vmatprep.subr.mxu0 %v656
        %694 = vmatpush1.msra.mxu0 %v655
        %695 = vmatprep.subr.mxu0 %v654
        %696 = vmatpush1.msra.mxu0 %v653
        %697 = vmatprep.subr.mxu0 %v652
        %698 = vmatpush1.msra.mxu0 %v651
        %699 = vmatprep.subr.mxu0 0.0
        %700 = vmatpush2.msra.mxu0 0.0
        %701 = vmatprep.subr.mxu0 0.0
        %702 = vmatpush2.msra.mxu0 0.0
        %703 = vmatprep.subr.mxu0 0.0
        %704 = vmatpush2.msra.mxu0 0.0
        %705 = vmatprep.subr.mxu0 0.0
        %706 = vmatpush2.msra.mxu0 0.0
        %707 = vmatprep.subr.mxu0 0.0
        %708 = vmatpush2.msra.mxu0 0.0
        %709 = vmatprep.subr.mxu0 0.0
        %710 = vmatpush2.msra.mxu0 0.0
        %711 = vmatprep.subr.mxu0 0.0
        %712 = vmatpush2.msra.mxu0 0.0
        %713 = vmatprep.subr.mxu0 0.0
        %714 = vmatpush2.msra.mxu0 0.0
        %715 = vmatprep.subr.mxu0 0.0
        %716 = vmatpush2.msra.mxu0 0.0
        %717 = vmatprep.subr.mxu0 0.0
        %718 = vmatpush2.msra.mxu0 0.0
        %719 = vmatprep.subr.mxu0 0.0
        %720 = vmatpush2.msra.mxu0 0.0
        %721 = vmatprep.subr.mxu0 0.0
        %722 = vmatpush2.msra.mxu0 0.0
        %723 = vmatprep.subr.mxu0 0.0
        %724 = vmatpush2.msra.mxu0 0.0
        %725 = vmatprep.subr.mxu0 0.0
        %726 = vmatpush2.msra.mxu0 0.0
        %727 = vmatprep.subr.mxu0 0.0
        %728 = vmatpush2.msra.mxu0 0.0
        %729 = vmatprep.subr.mxu0 0.0
        %730 = vmatpush2.msra.mxu0 0.0
        %731 = vmatprep.mubr.f32.mxu0 0.0
        %732 = vmatmul.mubr.f32.gmra.mxu0 %v351
        %v733 = vpop.f32.mrf.mxu0
        %v734 = vadd.f32 %v319, %v733
        %v735 = vpop.f32.mrf.mxu0
        %v736 = vadd.f32 %v319, %v735
        %737 = vmatprep.mubr.f32.mxu0 0.0
        %738 = vmatmul.mubr.f32.gmra.mxu0 %v354
        %v739 = vpop.f32.mrf.mxu0
        %v740 = vadd.f32 %v323, %v739
        %v741 = vpop.f32.mrf.mxu0
        %v742 = vadd.f32 %v323, %v741
        %743 = vmatprep.mubr.f32.mxu0 0.0
        %744 = vmatmul.mubr.f32.gmra.mxu0 %v357
        %v745 = vpop.f32.mrf.mxu0
        %v746 = vadd.f32 %v327, %v745
        %v747 = vpop.f32.mrf.mxu0
        %v748 = vadd.f32 %v327, %v747
        %749 = vmatprep.mubr.f32.mxu0 0.0
        %750 = vmatmul.mubr.f32.gmra.mxu0 %v360
        %v751 = vpop.f32.mrf.mxu0
        %v752 = vadd.f32 %v331, %v751
        %v753 = vpop.f32.mrf.mxu0
        %v754 = vadd.f32 %v331, %v753
        %755 = vmatprep.mubr.f32.mxu0 0.0
        %756 = vmatmul.mubr.f32.gmra.mxu0 %v363
        %v757 = vpop.f32.mrf.mxu0
        %v758 = vadd.f32 %v335, %v757
        %v759 = vpop.f32.mrf.mxu0
        %v760 = vadd.f32 %v335, %v759
        %761 = vmatprep.mubr.f32.mxu0 0.0
        %762 = vmatmul.mubr.f32.gmra.mxu0 %v366
        %v763 = vpop.f32.mrf.mxu0
        %v764 = vadd.f32 %v339, %v763
        %v765 = vpop.f32.mrf.mxu0
        %v766 = vadd.f32 %v339, %v765
        %767 = vmatprep.mubr.f32.mxu0 0.0
        %768 = vmatmul.mubr.f32.gmra.mxu0 %v369
        %v769 = vpop.f32.mrf.mxu0
        %v770 = vadd.f32 %v343, %v769
        %v771 = vpop.f32.mrf.mxu0
        %v772 = vadd.f32 %v343, %v771
        %773 = vmatprep.mubr.f32.mxu0 0.0
        %774 = vmatmul.mubr.f32.gmra.mxu0 %v372
        %v775 = vpop.f32.mrf.mxu0
        %v776 = vadd.f32 %v347, %v775
        %v777 = vpop.f32.mrf.mxu0
        %v778 = vadd.f32 %v347, %v777
        %779 = vdwg.mxu0
        %v780 = vtanh.pop %v734
        %v781 = vtanh.pop %v736
        %v782 = vtanh.pop %v740
        %v783 = vtanh.pop %v742
        %v784 = vtanh.pop %v746
        %v785 = vtanh.pop %v748
        %v786 = vtanh.pop %v752
        %v787 = vtanh.pop %v754
        %v788 = vtanh.pop %v758
        %v789 = vtanh.pop %v760
        %v790 = vtanh.pop %v764
        %v791 = vtanh.pop %v766
        %v792 = vtanh.pop %v770
        %v793 = vtanh.pop %v772
        %v794 = vtanh.pop %v776
        %v795 = vtanh.pop %v778
        %v796 = vmul.f32 %v505, %v780
        %v797 = vmul.f32 %v505, %v781
        %v798 = vmul.f32 %v509, %v782
        %v799 = vmul.f32 %v509, %v783
        %v800 = vmul.f32 %v513, %v784
        %v801 = vmul.f32 %v513, %v785
        %v802 = vmul.f32 %v517, %v786
        %v803 = vmul.f32 %v517, %v787
        %v804 = vmul.f32 %v521, %v788
        %v805 = vmul.f32 %v521, %v789
        %v806 = vmul.f32 %v525, %v790
        %v807 = vmul.f32 %v525, %v791
        %v808 = vmul.f32 %v529, %v792
        %v809 = vmul.f32 %v529, %v793
        %v810 = vmul.f32 %v533, %v794
        %v811 = vmul.f32 %v533, %v795
        %v812 = vadd.f32 %v796, %v798
        %v813 = vadd.f32 %v812, %v800
        %v814 = vadd.f32 %v813, %v802
        %v815 = vadd.f32 %v814, %v804
        %v816 = vadd.f32 %v815, %v806
        %v817 = vadd.f32 %v816, %v808
        %v818 = vadd.f32 %v817, %v810
        %v819 = vrot.slane %v818, 4
        %v820 = vadd.f32 %v818, %v819
        %v821 = vrot.slane %v820, 2
        %v822 = vadd.f32 %v820, %v821
        %v823 = vrot.slane %v822, 1
        %v824 = vadd.f32 %v822, %v823
        %v825 = vadd.f32 %v797, %v799
        %v826 = vadd.f32 %v825, %v801
        %v827 = vadd.f32 %v826, %v803
        %v828 = vadd.f32 %v827, %v805
        %v829 = vadd.f32 %v828, %v807
        %v830 = vadd.f32 %v829, %v809
        %v831 = vadd.f32 %v830, %v811
        %v832 = vrot.slane %v831, 4
        %v833 = vadd.f32 %v831, %v832
        %v834 = vrot.slane %v833, 2
        %v835 = vadd.f32 %v833, %v834
        %v836 = vrot.slane %v835, 1
        %v837 = vadd.f32 %v835, %v836
        %v838 = vadd.f32 %v824, %v579
        %v839 = vadd.f32 %v837, %v579
        %v842 = vcombine.low %v838, %v839
        %v844 = vunpack.c.l.s4 1966171168
        %v845 = vunpack.c.0.s8 %v844
        %v846 = vlaneseq
        %v847 = vshrl.u32 %v846, 7
        %v848 = vsub.s32 %v845, %v847
        %v849 = vrot.slane %v842, %v848
        %v851 = vunpack.c.l.s4 1966171168
        %v852 = vunpack.c.0.s8 %v851
        %v853 = vlaneseq
        %v854 = vshrl.u32 %v853, 7
        %v855 = vsub.s32 %v852, %v854
        %v856 = vrot.slane %v849, %v855
        %s858 = scalar_lea.vmem %s162, 2 [#allocation2]
        %859 = vst.msk [vmem:[%s858] sm:$0x3] %vm604, %v856
        %s860 = sand.u32 %s93, 1
        %s861 = scalar_lea.sflag [#allocation3], %s860
        %s862 = sand.u32 %s93, 1
        %s863 = smul.addr %s862, 4
        %s864 = scalar_lea.vmem [#allocation2], %s863
        // Predicated region
        $region33: #{tpu_custom_call.1} parent=31 // pred_check
          %p865 = pneg %p103
        $region34: #{tpu_custom_call.1} parent=31 // pred_check_branch
          %867 = sbr.rel (%p865) target = $region36
        $region35: #{tpu_custom_call.1} parent=31 // pred_region
          %s868 = smul.u32 4, %s17
          %s870 = ssub.s32 64, 64
          %871 = vsyncadd %s861, %s870
          %s872 = smul.addr %s868, 16
          %s873 = scalar_lea.hbm %s3, %s872
          %s875 = sshll.u32 %s864, 4
          %s876 = int_to_ptr.vmem [resolvable:$true] %s875
          %878 = dma.vmem_to_hbm [thread:$0]  %s876, 64, %s873, %s861
        $region36: #{tpu_custom_call.1} parent=31 // pred_fallthru
          _
      $region32: #{tpu_custom_call.1} parent=5 // pred_fallthru
        _
      %p879 = scmp.le.s32.totalorder 2, %s12
      // Predicated region
      $region37: #{tpu_custom_call.1} parent=5 // pred_check
        %p880 = pneg %p879
      $region38: #{tpu_custom_call.1} parent=5 // pred_check_branch
        %882 = sbr.rel (%p880) target = $region40
      $region39: #{tpu_custom_call.1} parent=5 // pred_region
        %s883 = ssub.s32 %s12, 2
        // Predicated region
        $region41: #{tpu_custom_call.1} parent=39 // pred_check
          %p884 = pneg %p109
        $region42: #{tpu_custom_call.1} parent=39 // pred_check_branch
          %886 = sbr.rel (%p884) target = $region44
        $region43: #{tpu_custom_call.1} parent=39 // pred_region
          %s887 = sand.u32 %s94, 1
          %s888 = scalar_lea.sflag [#allocation3], %s887
          %s889 = sand.u32 %s94, 1
          %s890 = smul.addr %s889, 4
          %s891 = scalar_lea.vmem [#allocation2], %s890
          %892 = dma.done %s888, 64
        $region44: #{tpu_custom_call.1} parent=39 // pred_fallthru
          _
      $region40: #{tpu_custom_call.1} parent=5 // pred_fallthru
        _
    $region6: #{tpu_custom_call.1} parent=1 // loop_footer
      %s16 = sadd.s32 1, %s12
    $region7: #{tpu_custom_call.1} parent=1 // loop_footer_branch
      %11 = sbr.rel target = $region3
    $region8: #{tpu_custom_call.1} parent=1 // loop_exit
      _
    %893 = vsyncpa [#allocation3], 1
    %s894 = scalar_lea.sflag [#allocation3], 1
    %895 = vsyncpa %s894, 1

</llo_original>
